<compile_context>
chip_gen: v5e
topology: v5e:2x2
jax: 0.10.0
libtpu: 0.0.40
codegen_flags: <defaults>
</compile_context>

<pallas_src>
import jax
import jax.numpy as jnp
from jax.experimental import pallas as pl
from jax.experimental.pallas import tpu as pltpu

N_STATES = 3
HID = 100
HID_PAD = 128            # 100 -> 128 (lane-aligned hidden width)
CAT_PAD = 2 * HID_PAD    # 256 (padded concat width)
IN_PAD = 8               # [s | s_next] = 6 features, padded to 8
N_OUT = 2                # packed [mu, sig] output


def _round_up(x, m):
    return ((x + m - 1) // m) * m


def planning_kernel(xin_ref, win_ref, bin_ref, wc_ref, bc_ref, wh_ref, bh_ref, out_ref):
    # Fused fc1/fc2: block-diagonal packed weight; bf16 operands, f32 accumulation.
    x16 = xin_ref[...].astype(jnp.bfloat16)                                   # (TB, 8)
    h = jnp.dot(x16, win_ref[...], preferred_element_type=jnp.float32) + bin_ref[...]
    h = jnp.maximum(h, 0.0)                                                   # (TB, 256) f32

    # Combine layer: concat([h1, h2]) @ Wc is implicit in the packed (256, 128) weight.
    z = jnp.dot(h.astype(jnp.bfloat16), wc_ref[...],
                preferred_element_type=jnp.float32) + bc_ref[...]
    z = jnp.maximum(z, 0.0)                                                   # (TB, 128) f32

    # Fused heads: column 0 -> mu_head, column 1 -> var.
    head = jnp.dot(z.astype(jnp.bfloat16), wh_ref[...],
                   preferred_element_type=jnp.float32) + bh_ref[...]          # (TB, 2) f32

    mu = 2.0 * jnp.tanh(head)
    sig = jnp.where(head > 0.0, head, jnp.exp(jnp.minimum(head, 0.0)) - 1.0) + 1.0
    col = jax.lax.broadcasted_iota(jnp.int32, head.shape, dimension=1)
    out_ref[...] = jnp.where(col == 0, mu, sig)                               # [mu | sig]


@jax.jit
def planning_forward(s, s_next, packed):
    """s, s_next: (B, 3) float32. Returns (mu, sig), each (B, 1) float32."""
    B = s.shape[0]
    TB = min(256, _round_up(B, 8))       # batch block (one block for small B)
    BB = _round_up(B, TB)                # padded batch
    grid = (BB // TB,)

    xin = jnp.concatenate([s, s_next], axis=1).astype(jnp.float32)            # (B, 6)
    xin = jnp.pad(xin, ((0, BB - B), (0, IN_PAD - 2 * N_STATES)))             # (BB, 8)

    w_in, b_in = packed["w_in"], packed["b_in"]
    wc, bc = packed["wc"], packed["bc"]
    wh, bh = packed["w_head"], packed["b_head"]

    def fixed(shape):                    # whole array, invariant across the batch grid
        return pl.BlockSpec(shape, lambda i: tuple(0 for _ in shape))

    weight_bytes = (w_in.size + wc.size + wh.size) * 2 + (b_in.size + bc.size + bh.size) * 4
    cost = pl.CostEstimate(
        flops=2 * BB * (IN_PAD * CAT_PAD + CAT_PAD * HID_PAD + HID_PAD * N_OUT),
        transcendentals=2 * BB * N_OUT,
        bytes_accessed=weight_bytes + xin.size * 4 + BB * N_OUT * 4,
    )

    out = pl.pallas_call(
        planning_kernel,
        out_shape=jax.ShapeDtypeStruct((BB, N_OUT), jnp.float32),
        grid=grid,
        in_specs=[
            pl.BlockSpec((TB, IN_PAD), lambda i: (i, 0)),
            fixed(w_in.shape), fixed(b_in.shape),
            fixed(wc.shape), fixed(bc.shape),
            fixed(wh.shape), fixed(bh.shape),
        ],
        out_specs=pl.BlockSpec((TB, N_OUT), lambda i: (i, 0)),
        compiler_params=pltpu.CompilerParams(dimension_semantics=("parallel",)),
        cost_estimate=cost,
    )(xin, w_in, b_in, wc, bc, wh, bh)

    return out[:B, 0:1], out[:B, 1:2]


def init_params(key):
    """Torch nn.Linear-style init (U[-1/sqrt(fan_in), 1/sqrt(fan_in)]), raw f32 layout."""
    def linear(key, fan_in, fan_out):
        kw, kb = jax.random.split(key)
        bound = 1.0 / jnp.sqrt(jnp.float32(fan_in))
        w = jax.random.uniform(kw, (fan_in, fan_out), jnp.float32, -bound, bound)
        b = jax.random.uniform(kb, (1, fan_out), jnp.float32, -bound, bound)
        return w, b

    k1, k2, k3, k4, k5 = jax.random.split(key, 5)
    w1, b1 = linear(k1, N_STATES, HID)        # fc1
    w2, b2 = linear(k2, N_STATES, HID)        # fc2
    wc, bc = linear(k3, 2 * HID, HID)         # fc (operates on concat)
    wmu, bmu = linear(k4, HID, 1)             # mu_head
    wv, bv = linear(k5, HID, 1)               # var
    return {"w1": w1, "b1": b1, "w2": w2, "b2": b2, "wc": wc, "bc": bc,
            "wmu": wmu, "bmu": bmu, "wv": wv, "bv": bv}


def pack_params(p):
    """Pad to lane-aligned shapes, fuse layers, cast weights to bf16 (biases stay f32)."""
    w_in = jnp.zeros((IN_PAD, CAT_PAD), jnp.float32)
    w_in = w_in.at[0:N_STATES, 0:HID].set(p["w1"])
    w_in = w_in.at[N_STATES:2 * N_STATES, HID_PAD:HID_PAD + HID].set(p["w2"])
    b_in = jnp.zeros((1, CAT_PAD), jnp.float32)
    b_in = b_in.at[:, 0:HID].set(p["b1"])
    b_in = b_in.at[:, HID_PAD:HID_PAD + HID].set(p["b2"])

    wc_full = jnp.zeros((CAT_PAD, HID_PAD), jnp.float32)
    wc_full = wc_full.at[0:HID, 0:HID].set(p["wc"][:HID])
    wc_full = wc_full.at[HID_PAD:HID_PAD + HID, 0:HID].set(p["wc"][HID:])
    bc_full = jnp.zeros((1, HID_PAD), jnp.float32)
    bc_full = bc_full.at[:, 0:HID].set(p["bc"])

    w_head = jnp.zeros((HID_PAD, N_OUT), jnp.float32)
    w_head = w_head.at[0:HID, 0:1].set(p["wmu"])
    w_head = w_head.at[0:HID, 1:2].set(p["wv"])
    b_head = jnp.concatenate([p["bmu"], p["bv"]], axis=1)                     # (1, 2)

    return {
        "w_in": w_in.astype(jnp.bfloat16), "b_in": b_in,
        "wc": wc_full.astype(jnp.bfloat16), "bc": bc_full,
        "w_head": w_head.astype(jnp.bfloat16), "b_head": b_head,
    }


def planning_ref_f32(s, s_next, p):
    """Exact PyTorch Planning.forward semantics, full f32."""
    h1 = jnp.maximum(s @ p["w1"] + p["b1"], 0.0)
    h2 = jnp.maximum(s_next @ p["w2"] + p["b2"], 0.0)
    cat = jnp.concatenate([h1, h2], axis=-1)
    x = jnp.maximum(cat @ p["wc"] + p["bc"], 0.0)
    mu = 2.0 * jnp.tanh(x @ p["wmu"] + p["bmu"])
    v = x @ p["wv"] + p["bv"]
    sig = jnp.where(v > 0.0, v, jnp.exp(jnp.minimum(v, 0.0)) - 1.0) + 1.0
    return mu, sig


def planning_ref_bf16(s, s_next, packed):
    """Same numerics as the kernel (bf16 MXU operands, f32 accumulation)."""
    xin = jnp.pad(jnp.concatenate([s, s_next], axis=1),
                  ((0, 0), (0, IN_PAD - 2 * N_STATES)))
    h = jnp.maximum(jnp.dot(xin.astype(jnp.bfloat16), packed["w_in"],
                            preferred_element_type=jnp.float32) + packed["b_in"], 0.0)
    z = jnp.maximum(jnp.dot(h.astype(jnp.bfloat16), packed["wc"],
                            preferred_element_type=jnp.float32) + packed["bc"], 0.0)
    head = jnp.dot(z.astype(jnp.bfloat16), packed["w_head"],
                   preferred_element_type=jnp.float32) + packed["b_head"]
    mu = 2.0 * jnp.tanh(head[:, 0:1])
    v = head[:, 1:2]
    sig = jnp.where(v > 0.0, v, jnp.exp(jnp.minimum(v, 0.0)) - 1.0) + 1.0
    return mu, sig


if __name__ == "__main__":
    key = jax.random.PRNGKey(0)
    kp, ks, ksn = jax.random.split(key, 3)
    raw = init_params(kp)
    packed = pack_params(raw)

    # B=1 matches Planning.forward (single pendulum state unsqueezed); B=4 exercises padding.
    for B in (1, 4):
        s = jax.random.normal(jax.random.fold_in(ks, B), (B, N_STATES), dtype=jnp.float32)
        s_next = jax.random.normal(jax.random.fold_in(ksn, B), (B, N_STATES), dtype=jnp.float32)

        mu, sig = planning_forward(s, s_next, packed)
        mu, sig = jax.block_until_ready((mu, sig))

        # Check against a reference with identical (bf16-matmul) numerics.
        mu_b, sig_b = planning_ref_bf16(s, s_next, packed)
        assert jnp.allclose(mu, mu_b, atol=2e-3), (mu, mu_b)
        assert jnp.allclose(sig, sig_b, atol=2e-3), (sig, sig_b)

        # Loose check against the exact f32 PyTorch-semantics reference.
        mu_f, sig_f = planning_ref_f32(s, s_next, raw)
        assert jnp.allclose(mu, mu_f, atol=1e-1), (mu, mu_f)
        assert jnp.allclose(sig, sig_f, atol=1e-1), (sig, sig_f)

    print("KERNEL_OK")
</pallas_src>

<mosaic_0001>
module attributes {stable_mosaic.version = 11 : i64} {
  func.func @planning_kernel(%arg0: i32, %arg1: memref<8x8xf32, #tpu.memory_space<vmem>>, %arg2: memref<8x256xbf16, #tpu.memory_space<vmem>>, %arg3: memref<1x256xf32, #tpu.memory_space<vmem>>, %arg4: memref<256x128xbf16, #tpu.memory_space<vmem>>, %arg5: memref<1x128xf32, #tpu.memory_space<vmem>>, %arg6: memref<128x2xbf16, #tpu.memory_space<vmem>>, %arg7: memref<1x2xf32, #tpu.memory_space<vmem>>, %arg8: memref<8x2xf32, #tpu.memory_space<vmem>>) attributes {dimension_semantics = [#tpu.dimension_semantics<parallel>], iteration_bounds = array<i64: 1>, scalar_prefetch = 0 : i64, scratch_operands = 0 : i64, tpu.core_type = #tpu.core_type<tc>, window_params = [{transform_indices = @transform_0, window_bounds = array<i64: 8, 8>}, {pipeline_mode = #tpu.pipeline_mode<synchronous>, transform_indices = @transform_1, window_bounds = array<i64: 8, 256>}, {pipeline_mode = #tpu.pipeline_mode<synchronous>, transform_indices = @transform_2, window_bounds = array<i64: 1, 256>}, {pipeline_mode = #tpu.pipeline_mode<synchronous>, transform_indices = @transform_3, window_bounds = array<i64: 256, 128>}, {pipeline_mode = #tpu.pipeline_mode<synchronous>, transform_indices = @transform_4, window_bounds = array<i64: 1, 128>}, {pipeline_mode = #tpu.pipeline_mode<synchronous>, transform_indices = @transform_5, window_bounds = array<i64: 128, 2>}, {pipeline_mode = #tpu.pipeline_mode<synchronous>, transform_indices = @transform_6, window_bounds = array<i64: 1, 2>}, {transform_indices = @transform_7, window_bounds = array<i64: 8, 2>}]} {
    %c0 = arith.constant 0 : index
    %c0_0 = arith.constant 0 : index
    %0 = vector.load %arg1[%c0, %c0_0] : memref<8x8xf32, #tpu.memory_space<vmem>>, vector<8x8xf32>
    %1 = arith.truncf %0 : vector<8x8xf32> to vector<8x8xbf16>
    %c0_1 = arith.constant 0 : index
    %c0_2 = arith.constant 0 : index
    %2 = vector.load %arg2[%c0_1, %c0_2] : memref<8x256xbf16, #tpu.memory_space<vmem>>, vector<8x256xbf16>
    %cst = arith.constant dense<0.000000e+00> : vector<8x256xf32>
    %3 = tpu.matmul %1, %2, %cst {dimension_numbers = #tpu.dot_dimension_numbers<[1], [0], [0], [1], [0, 0, 1, 1], [], []>} : vector<8x8xbf16>, vector<8x256xbf16>, vector<8x256xf32> -> vector<8x256xf32>
    %c0_3 = arith.constant 0 : index
    %c0_4 = arith.constant 0 : index
    %4 = vector.load %arg3[%c0_3, %c0_4] : memref<1x256xf32, #tpu.memory_space<vmem>>, vector<1x256xf32>
    %5 = vector.broadcast %4 : vector<1x256xf32> to vector<8x256xf32>
    %6 = arith.addf %3, %5 : vector<8x256xf32>
    %cst_5 = arith.constant 0.000000e+00 : f32
    %7 = vector.broadcast %cst_5 : f32 to vector<8x256xf32>
    %8 = arith.maximumf %6, %7 : vector<8x256xf32>
    %9 = arith.truncf %8 : vector<8x256xf32> to vector<8x256xbf16>
    %c0_6 = arith.constant 0 : index
    %c0_7 = arith.constant 0 : index
    %10 = vector.load %arg4[%c0_6, %c0_7] : memref<256x128xbf16, #tpu.memory_space<vmem>>, vector<256x128xbf16>
    %cst_8 = arith.constant dense<0.000000e+00> : vector<8x128xf32>
    %11 = tpu.matmul %9, %10, %cst_8 {dimension_numbers = #tpu.dot_dimension_numbers<[1], [0], [0], [1], [0, 0, 1, 1], [], []>} : vector<8x256xbf16>, vector<256x128xbf16>, vector<8x128xf32> -> vector<8x128xf32>
    %c0_9 = arith.constant 0 : index
    %c0_10 = arith.constant 0 : index
    %12 = vector.load %arg5[%c0_9, %c0_10] : memref<1x128xf32, #tpu.memory_space<vmem>>, vector<1x128xf32>
    %13 = vector.broadcast %12 : vector<1x128xf32> to vector<8x128xf32>
    %14 = arith.addf %11, %13 : vector<8x128xf32>
    %cst_11 = arith.constant 0.000000e+00 : f32
    %15 = vector.broadcast %cst_11 : f32 to vector<8x128xf32>
    %16 = arith.maximumf %14, %15 : vector<8x128xf32>
    %17 = arith.truncf %16 : vector<8x128xf32> to vector<8x128xbf16>
    %c0_12 = arith.constant 0 : index
    %c0_13 = arith.constant 0 : index
    %18 = vector.load %arg6[%c0_12, %c0_13] : memref<128x2xbf16, #tpu.memory_space<vmem>>, vector<128x2xbf16>
    %cst_14 = arith.constant dense<0.000000e+00> : vector<8x2xf32>
    %19 = tpu.matmul %17, %18, %cst_14 {dimension_numbers = #tpu.dot_dimension_numbers<[1], [0], [0], [1], [0, 0, 1, 1], [], []>} : vector<8x128xbf16>, vector<128x2xbf16>, vector<8x2xf32> -> vector<8x2xf32>
    %c0_15 = arith.constant 0 : index
    %c0_16 = arith.constant 0 : index
    %20 = vector.load %arg7[%c0_15, %c0_16] : memref<1x2xf32, #tpu.memory_space<vmem>>, vector<1x2xf32>
    %21 = vector.broadcast %20 : vector<1x2xf32> to vector<8x2xf32>
    %22 = arith.addf %19, %21 : vector<8x2xf32>
    %23 = math.tanh %22 : vector<8x2xf32>
    %cst_17 = arith.constant 2.000000e+00 : f32
    %24 = vector.broadcast %cst_17 : f32 to vector<8x2xf32>
    %25 = arith.mulf %24, %23 : vector<8x2xf32>
    %cst_18 = arith.constant 0.000000e+00 : f32
    %26 = vector.broadcast %cst_18 : f32 to vector<8x2xf32>
    %27 = arith.cmpf ogt, %22, %26 : vector<8x2xf32>
    %cst_19 = arith.constant 0.000000e+00 : f32
    %28 = vector.broadcast %cst_19 : f32 to vector<8x2xf32>
    %29 = arith.minimumf %22, %28 : vector<8x2xf32>
    %30 = math.exp %29 : vector<8x2xf32>
    %cst_20 = arith.constant 1.000000e+00 : f32
    %31 = vector.broadcast %cst_20 : f32 to vector<8x2xf32>
    %32 = arith.subf %30, %31 : vector<8x2xf32>
    %33 = arith.select %27, %22, %32 : vector<8x2xi1>, vector<8x2xf32>
    %cst_21 = arith.constant 1.000000e+00 : f32
    %34 = vector.broadcast %cst_21 : f32 to vector<8x2xf32>
    %35 = arith.addf %33, %34 : vector<8x2xf32>
    %36 = tpu.iota {dimensions = array<i32: 1>} : vector<8x2xi32>
    %c0_i32 = arith.constant 0 : i32
    %37 = vector.broadcast %c0_i32 : i32 to vector<8x2xi32>
    %38 = arith.cmpi eq, %36, %37 : vector<8x2xi32>
    %39 = arith.select %38, %25, %35 : vector<8x2xi1>, vector<8x2xf32>
    %c0_22 = arith.constant 0 : index
    %c0_23 = arith.constant 0 : index
    %40 = vector.load %arg8[%c0_22, %c0_23] : memref<8x2xf32, #tpu.memory_space<vmem>>, vector<8x2xf32>
    tpu.vector_store %arg8[%c0_22, %c0_23], %39 {strides = array<i32>} : memref<8x2xf32, #tpu.memory_space<vmem>>, vector<8x2xf32>,
    return
  }
  func.func @transform_0(%arg0: i32) -> (i32, i32) {
    %c0_i32 = arith.constant 0 : i32
    %c0_i32_0 = arith.constant 0 : i32
    return %arg0, %c0_i32 : i32, i32
  }
  func.func @transform_1(%arg0: i32) -> (i32, i32) {
    %c0_i32 = arith.constant 0 : i32
    %c0_i32_0 = arith.constant 0 : i32
    %c0_i32_1 = arith.constant 0 : i32
    return %c0_i32, %c0_i32_0 : i32, i32
  }
  func.func @transform_2(%arg0: i32) -> (i32, i32) {
    %c0_i32 = arith.constant 0 : i32
    %c0_i32_0 = arith.constant 0 : i32
    %c0_i32_1 = arith.constant 0 : i32
    return %c0_i32, %c0_i32_0 : i32, i32
  }
  func.func @transform_3(%arg0: i32) -> (i32, i32) {
    %c0_i32 = arith.constant 0 : i32
    %c0_i32_0 = arith.constant 0 : i32
    %c0_i32_1 = arith.constant 0 : i32
    return %c0_i32, %c0_i32_0 : i32, i32
  }
  func.func @transform_4(%arg0: i32) -> (i32, i32) {
    %c0_i32 = arith.constant 0 : i32
    %c0_i32_0 = arith.constant 0 : i32
    %c0_i32_1 = arith.constant 0 : i32
    return %c0_i32, %c0_i32_0 : i32, i32
  }
  func.func @transform_5(%arg0: i32) -> (i32, i32) {
    %c0_i32 = arith.constant 0 : i32
    %c0_i32_0 = arith.constant 0 : i32
    %c0_i32_1 = arith.constant 0 : i32
    return %c0_i32, %c0_i32_0 : i32, i32
  }
  func.func @transform_6(%arg0: i32) -> (i32, i32) {
    %c0_i32 = arith.constant 0 : i32
    %c0_i32_0 = arith.constant 0 : i32
    %c0_i32_1 = arith.constant 0 : i32
    return %c0_i32, %c0_i32_0 : i32, i32
  }
  func.func @transform_7(%arg0: i32) -> (i32, i32) {
    %c0_i32 = arith.constant 0 : i32
    %c0_i32_0 = arith.constant 0 : i32
    return %arg0, %c0_i32 : i32, i32
  }
}

</mosaic_0001>

<llo_original>
// kernel: planning_forward.1
$region0: #{planning_forward.1}
  #allocation0 [shape = 'u32[]', space=smem, size = 0x4, offset = 0x4, fixed_abs, tag = 'smem constant byte address 0x4 - core index']
  #allocation1 [shape = 'u32[72,128]{1,0:T(1,128)}', space=vmem, size = 0x9000, scoped, tag = 'internal scratch']
  %s0 = inlined_call_operand.vmem [shape: f32[8,8], index: 0, kind: input, shape index: {}]
  %s1 = inlined_call_operand.vmem [shape: bf16[8,256], index: 1, kind: input, shape index: {}]
  %s2 = inlined_call_operand.vmem [shape: f32[1,256], index: 2, kind: input, shape index: {}]
  %s3 = inlined_call_operand.hbm [shape: bf16[256,128], index: 3, kind: input, shape index: {}]
  %s4 = inlined_call_operand.vmem [shape: f32[1,128], index: 4, kind: input, shape index: {}]
  %s5 = inlined_call_operand.vmem [shape: bf16[128,2], index: 5, kind: input, shape index: {}]
  %s6 = inlined_call_operand.vmem [shape: f32[1,2], index: 6, kind: input, shape index: {}]
  %s7 = inlined_call_operand.vmem [shape: f32[8,2], index: 7, kind: output, shape index: {}]
  %s8 = sld [smem:[#allocation0]]
  $region42: #{planning_forward.1} parent=0
    _
  %s10 = ssub.s32 1, %s8
  %s11 = scalar_select 0, %s10, %s8
  $region1: #{planning_forward.1} parent=0
    #allocation2 [shape = 'u8[65536]{0}', space=vmem, size = 0x10000, scoped, tag = 'input window, operand 3, single buffered']
    #allocation3 [shape = 's32[1]{0}', space=sflag, size = 0x4, scoped, tag = 'scoped memory for planning_forward.1']
    %12 = vsyncpa [#allocation3], 0
    // Predicated region
    $region2: #{planning_forward.1} parent=1 // pred_check
      _
    $region3: #{planning_forward.1} parent=1 // pred_check_branch
      %14 = sbr.rel (0) target = $region5
    $region4: #{planning_forward.1} parent=1 // pred_region
      _
    $region5: #{planning_forward.1} parent=1 // pred_fallthru
      _
    // Predicated region
    $region6: #{planning_forward.1} parent=1 // pred_check
      _
    $region7: #{planning_forward.1} parent=1 // pred_check_branch
      %16 = sbr.rel (0) target = $region9
    $region8: #{planning_forward.1} parent=1 // pred_region
      _
    $region9: #{planning_forward.1} parent=1 // pred_fallthru
      _
    // Predicated region
    $region10: #{planning_forward.1} parent=1 // pred_check
      _
    $region11: #{planning_forward.1} parent=1 // pred_check_branch
      %18 = sbr.rel (0) target = $region13
    $region12: #{planning_forward.1} parent=1 // pred_region
      _
    $region13: #{planning_forward.1} parent=1 // pred_fallthru
      _
    // Predicated region
    $region14: #{planning_forward.1} parent=1 // pred_check
      _
    $region15: #{planning_forward.1} parent=1 // pred_check_branch
      %20 = sbr.rel (0) target = $region17
    $region16: #{planning_forward.1} parent=1 // pred_region
      %22 = vsyncadd [#allocation3], 0
      %s23 = sshll.u32 %s3, 4
      %s24 = int_to_ptr.hbm [resolvable:$true] %s23
      %s25 = sshll.u32 [#allocation2], 4
      %s26 = int_to_ptr.vmem [resolvable:$true] %s25
      %31 = dma.hbm_to_vmem [thread:$0]  %s24, 2048, %s26, [#allocation3], 64, 64, 4
    $region17: #{planning_forward.1} parent=1 // pred_fallthru
      _
    // Predicated region
    $region18: #{planning_forward.1} parent=1 // pred_check
      _
    $region19: #{planning_forward.1} parent=1 // pred_check_branch
      %33 = sbr.rel (0) target = $region21
    $region20: #{planning_forward.1} parent=1 // pred_region
      _
    $region21: #{planning_forward.1} parent=1 // pred_fallthru
      _
    // Predicated region
    $region22: #{planning_forward.1} parent=1 // pred_check
      _
    $region23: #{planning_forward.1} parent=1 // pred_check_branch
      %35 = sbr.rel (0) target = $region25
    $region24: #{planning_forward.1} parent=1 // pred_region
      _
    $region25: #{planning_forward.1} parent=1 // pred_fallthru
      _
    // Predicated region
    $region26: #{planning_forward.1} parent=1 // pred_check
      _
    $region27: #{planning_forward.1} parent=1 // pred_check_branch
      %37 = sbr.rel (0) target = $region29
    $region28: #{planning_forward.1} parent=1 // pred_region
      _
    $region29: #{planning_forward.1} parent=1 // pred_fallthru
      _
    // Predicated region
    $region30: #{planning_forward.1} parent=1 // pred_check
      _
    $region31: #{planning_forward.1} parent=1 // pred_check_branch
      %39 = sbr.rel (0) target = $region33
    $region32: #{planning_forward.1} parent=1 // pred_region
      %41 = dma.done [#allocation3], 2048
    $region33: #{planning_forward.1} parent=1 // pred_fallthru
      _
    %v43 = vld [vmem:[%s0] sm:$0xff]
    %v44 = vpack.c.bf16 %v43, %v43
    %v45 = vld [vmem:[%s1] sm:$0xff]
    %v46 = vld [vmem:[%s2] sm:$0x3]
    %v48 = vperm.slane %v46, 0
    %v49 = vperm.slane %v46, 1
    %v53 = vunpack.c.l.b16 %v45
    %v54 = vunpack.c.h.b16 %v45
    %v55 = vpack.c.b16 %v53, %v53
    %v56 = vpack.c.b16 %v54, %v54
    %vm57 = vcmask 64512
    %v59 = vsel %vm57, %v44, 0
    %vm61 = vcmask 1043456
    %v63 = vsel %vm61, %v55, 0
    %v66 = vsel %vm61, %v56, 0
    %68 = vmatpush.bf16.msra.mxu0 0
    %69 = vmatpush.bf16.msra.mxu0 0
    %70 = vmatpush.bf16.msra.mxu0 0
    %71 = vmatpush.bf16.msra.mxu0 0
    %72 = vmatpush.bf16.msra.mxu0 0
    %73 = vmatpush.bf16.msra.mxu0 0
    %74 = vmatpush.bf16.msra.mxu0 0
    %75 = vmatpush.bf16.msra.mxu0 %v63
    %76 = vmatmul.bf16.gmra.mxu0 %v59
    %v77 = vpop.f32.mrf.mxu0
    %v78 = vadd.f32 %v48, %v77
    %v79 = vpop.f32.mrf.mxu0
    %80 = vdwg.mxu0
    %81 = vmatpush.bf16.msra.mxu0 0
    %82 = vmatpush.bf16.msra.mxu0 0
    %83 = vmatpush.bf16.msra.mxu0 0
    %84 = vmatpush.bf16.msra.mxu0 0
    %85 = vmatpush.bf16.msra.mxu0 0
    %86 = vmatpush.bf16.msra.mxu0 0
    %87 = vmatpush.bf16.msra.mxu0 0
    %88 = vmatpush.bf16.msra.mxu0 %v66
    %89 = vmatmul.bf16.gmra.mxu0 %v59
    %v90 = vpop.f32.mrf.mxu0
    %v91 = vadd.f32 %v49, %v90
    %v92 = vpop.f32.mrf.mxu0
    %93 = vdwg.mxu0
    %v94 = vmax.f32 %v78, 0.0
    %v95 = vmax.f32 %v91, 0.0
    %v96 = vpack.c.bf16 %v94, %v94
    %v97 = vpack.c.bf16 %v95, %v95
    %v98 = vld [vmem:[#allocation2] sm:$0xf]
    %v99 = vld [vmem:[#allocation2 + $0x4] sm:$0xf]
    %v100 = vld [vmem:[#allocation2 + $0x8] sm:$0xf]
    %v101 = vld [vmem:[#allocation2 + $0xc] sm:$0xf]
    %v102 = vld [vmem:[#allocation2 + $0x10] sm:$0xf]
    %v103 = vld [vmem:[#allocation2 + $0x14] sm:$0xf]
    %v104 = vld [vmem:[#allocation2 + $0x18] sm:$0xf]
    %v105 = vld [vmem:[#allocation2 + $0x1c] sm:$0xf]
    %v106 = vld [vmem:[#allocation2 + $0x20] sm:$0xf]
    %v107 = vld [vmem:[#allocation2 + $0x24] sm:$0xf]
    %v108 = vld [vmem:[#allocation2 + $0x28] sm:$0xf]
    %v109 = vld [vmem:[#allocation2 + $0x2c] sm:$0xf]
    %v110 = vld [vmem:[#allocation2 + $0x30] sm:$0xf]
    %v111 = vld [vmem:[#allocation2 + $0x34] sm:$0xf]
    %v112 = vld [vmem:[#allocation2 + $0x38] sm:$0xf]
    %v113 = vld [vmem:[#allocation2 + $0x3c] sm:$0xf]
    %v114 = vld [vmem:[#allocation2 + $0x40] sm:$0xf]
    %v115 = vld [vmem:[#allocation2 + $0x44] sm:$0xf]
    %v116 = vld [vmem:[#allocation2 + $0x48] sm:$0xf]
    %v117 = vld [vmem:[#allocation2 + $0x4c] sm:$0xf]
    %v118 = vld [vmem:[#allocation2 + $0x50] sm:$0xf]
    %v119 = vld [vmem:[#allocation2 + $0x54] sm:$0xf]
    %v120 = vld [vmem:[#allocation2 + $0x58] sm:$0xf]
    %v121 = vld [vmem:[#allocation2 + $0x5c] sm:$0xf]
    %v122 = vld [vmem:[#allocation2 + $0x60] sm:$0xf]
    %v123 = vld [vmem:[#allocation2 + $0x64] sm:$0xf]
    %v124 = vld [vmem:[#allocation2 + $0x68] sm:$0xf]
    %v125 = vld [vmem:[#allocation2 + $0x6c] sm:$0xf]
    %v126 = vld [vmem:[#allocation2 + $0x70] sm:$0xf]
    %v127 = vld [vmem:[#allocation2 + $0x74] sm:$0xf]
    %v128 = vld [vmem:[#allocation2 + $0x78] sm:$0xf]
    %v129 = vld [vmem:[#allocation2 + $0x7c] sm:$0xf]
    %v130 = vld [vmem:[%s4] sm:$0x1]
    %v132 = vperm.slane %v130, 0
    %v166 = vunpack.c.l.b16 %v98
    %v167 = vunpack.c.l.b16 %v99
    %v168 = vunpack.c.l.b16 %v100
    %v169 = vunpack.c.l.b16 %v101
    %v170 = vunpack.c.l.b16 %v102
    %v171 = vunpack.c.l.b16 %v103
    %v172 = vunpack.c.l.b16 %v104
    %v173 = vunpack.c.l.b16 %v105
    %v174 = vunpack.c.l.b16 %v106
    %v175 = vunpack.c.l.b16 %v107
    %v176 = vunpack.c.l.b16 %v108
    %v177 = vunpack.c.l.b16 %v109
    %v178 = vunpack.c.l.b16 %v110
    %v179 = vunpack.c.l.b16 %v111
    %v180 = vunpack.c.l.b16 %v112
    %v181 = vunpack.c.l.b16 %v113
    %v182 = vunpack.c.l.b16 %v114
    %v183 = vunpack.c.l.b16 %v115
    %v184 = vunpack.c.l.b16 %v116
    %v185 = vunpack.c.l.b16 %v117
    %v186 = vunpack.c.l.b16 %v118
    %v187 = vunpack.c.l.b16 %v119
    %v188 = vunpack.c.l.b16 %v120
    %v189 = vunpack.c.l.b16 %v121
    %v190 = vunpack.c.l.b16 %v122
    %v191 = vunpack.c.l.b16 %v123
    %v192 = vunpack.c.l.b16 %v124
    %v193 = vunpack.c.l.b16 %v125
    %v194 = vunpack.c.l.b16 %v126
    %v195 = vunpack.c.l.b16 %v127
    %v196 = vunpack.c.l.b16 %v128
    %v197 = vunpack.c.l.b16 %v129
    %v198 = vpack.c.b16 %v167, %v166
    %v199 = vpack.c.b16 %v169, %v168
    %v200 = vpack.c.b16 %v171, %v170
    %v201 = vpack.c.b16 %v173, %v172
    %v202 = vpack.c.b16 %v175, %v174
    %v203 = vpack.c.b16 %v177, %v176
    %v204 = vpack.c.b16 %v179, %v178
    %v205 = vpack.c.b16 %v181, %v180
    %v206 = vpack.c.b16 %v183, %v182
    %v207 = vpack.c.b16 %v185, %v184
    %v208 = vpack.c.b16 %v187, %v186
    %v209 = vpack.c.b16 %v189, %v188
    %v210 = vpack.c.b16 %v191, %v190
    %v211 = vpack.c.b16 %v193, %v192
    %v212 = vpack.c.b16 %v195, %v194
    %v213 = vpack.c.b16 %v197, %v196
    %230 = vmatpush.bf16.msra.mxu0 %v205
    %231 = vmatpush.bf16.msra.mxu0 %v204
    %232 = vmatpush.bf16.msra.mxu0 %v203
    %233 = vmatpush.bf16.msra.mxu0 %v202
    %234 = vmatpush.bf16.msra.mxu0 %v201
    %235 = vmatpush.bf16.msra.mxu0 %v200
    %236 = vmatpush.bf16.msra.mxu0 %v199
    %237 = vmatpush.bf16.msra.mxu0 %v198
    %238 = vmatmul.bf16.gmra.mxu0 %v96
    %v239 = vpop.f32.mrf.mxu0
    %v240 = vadd.f32 %v132, %v239
    %v241 = vpop.f32.mrf.mxu0
    %242 = vdwg.mxu0
    %243 = vmatpush.bf16.msra.mxu0 %v213
    %244 = vmatpush.bf16.msra.mxu0 %v212
    %245 = vmatpush.bf16.msra.mxu0 %v211
    %246 = vmatpush.bf16.msra.mxu0 %v210
    %247 = vmatpush.bf16.msra.mxu0 %v209
    %248 = vmatpush.bf16.msra.mxu0 %v208
    %249 = vmatpush.bf16.msra.mxu0 %v207
    %250 = vmatpush.bf16.msra.mxu0 %v206
    %251 = vmatmul.bf16.gmra.mxu0 %v97
    %v252 = vpop.f32.mrf.mxu0
    %v253 = vadd.f32 %v240, %v252
    %v254 = vpop.f32.mrf.mxu0
    %255 = vdwg.mxu0
    %v256 = vmax.f32 %v253, 0.0
    %v257 = vpack.c.bf16 %v256, %v256
    %v258 = vld [vmem:[%s5] sm:$0xf]
    %v259 = vld [vmem:[%s5 + $0x4] sm:$0xf]
    %v260 = vld [vmem:[%s5 + $0x8] sm:$0xf]
    %v261 = vld [vmem:[%s5 + $0xc] sm:$0xf]
    %v262 = vld [vmem:[%s5 + $0x10] sm:$0xf]
    %v263 = vld [vmem:[%s5 + $0x14] sm:$0xf]
    %v264 = vld [vmem:[%s5 + $0x18] sm:$0xf]
    %v265 = vld [vmem:[%s5 + $0x1c] sm:$0xf]
    %v266 = vld [vmem:[%s5 + $0x20] sm:$0xf]
    %v267 = vld [vmem:[%s5 + $0x24] sm:$0xf]
    %v268 = vld [vmem:[%s5 + $0x28] sm:$0xf]
    %v269 = vld [vmem:[%s5 + $0x2c] sm:$0xf]
    %v270 = vld [vmem:[%s5 + $0x30] sm:$0xf]
    %v271 = vld [vmem:[%s5 + $0x34] sm:$0xf]
    %v272 = vld [vmem:[%s5 + $0x38] sm:$0xf]
    %v273 = vld [vmem:[%s5 + $0x3c] sm:$0xf]
    %v274 = vld [vmem:[%s6] sm:$0x1]
    %v276 = vperm.slane %v274, 0
    %v294 = vunpack.c.l.b16 %v258
    %v295 = vunpack.c.l.b16 %v259
    %v296 = vunpack.c.l.b16 %v260
    %v297 = vunpack.c.l.b16 %v261
    %v298 = vunpack.c.l.b16 %v262
    %v299 = vunpack.c.l.b16 %v263
    %v300 = vunpack.c.l.b16 %v264
    %v301 = vunpack.c.l.b16 %v265
    %v302 = vunpack.c.l.b16 %v266
    %v303 = vunpack.c.l.b16 %v267
    %v304 = vunpack.c.l.b16 %v268
    %v305 = vunpack.c.l.b16 %v269
    %v306 = vunpack.c.l.b16 %v270
    %v307 = vunpack.c.l.b16 %v271
    %v308 = vunpack.c.l.b16 %v272
    %v309 = vunpack.c.l.b16 %v273
    %v310 = vpack.c.b16 %v295, %v294
    %v311 = vpack.c.b16 %v297, %v296
    %v312 = vpack.c.b16 %v299, %v298
    %v313 = vpack.c.b16 %v301, %v300
    %v314 = vpack.c.b16 %v303, %v302
    %v315 = vpack.c.b16 %v305, %v304
    %v316 = vpack.c.b16 %v307, %v306
    %v317 = vpack.c.b16 %v309, %v308
    %326 = vmatpush.bf16.msra.mxu0 %v317
    %327 = vmatpush.bf16.msra.mxu0 %v316
    %328 = vmatpush.bf16.msra.mxu0 %v315
    %329 = vmatpush.bf16.msra.mxu0 %v314
    %330 = vmatpush.bf16.msra.mxu0 %v313
    %331 = vmatpush.bf16.msra.mxu0 %v312
    %332 = vmatpush.bf16.msra.mxu0 %v311
    %333 = vmatpush.bf16.msra.mxu0 %v310
    %334 = vmatmul.bf16.gmra.mxu0 %v257
    %v335 = vpop.f32.mrf.mxu0
    %v336 = vadd.f32 %v276, %v335
    %v337 = vpop.f32.mrf.mxu0
    %338 = vdwg.mxu0
    %v339 = vtanh.pop %v336
    %v340 = vmul.f32 %v339, 2.0
    %vm341 = vcmp.gt.f32.partialorder %v336, 0.0
    %v342 = vmin.f32 %v336, 0.0
    %v343 = vmul.f32 %v342, 1.442695
    %v344 = vpow.pop %v343
    %v345 = vsub.f32 %v344, 1.0
    %v346 = vsel %vm341, %v336, %v345
    %v347 = vadd.f32 %v346, 1.0
    %v348 = vlaneseq
    %v349 = vand.u32 %v348, 127
    %vm350 = vcmp.eq.s32.totalorder %v349, 0
    %v351 = vsel %vm350, %v340, %v347
    %vm352 = vcmask 15360
    %353 = vst.msk [vmem:[%s7] sm:$0xff] %vm352, %v351
    // Predicated region
    $region34: #{planning_forward.1} parent=1 // pred_check
      _
    $region35: #{planning_forward.1} parent=1 // pred_check_branch
      %355 = sbr.rel (0) target = $region37
    $region36: #{planning_forward.1} parent=1 // pred_region
      _
    $region37: #{planning_forward.1} parent=1 // pred_fallthru
      _
    // Predicated region
    $region38: #{planning_forward.1} parent=1 // pred_check
      _
    $region39: #{planning_forward.1} parent=1 // pred_check_branch
      %357 = sbr.rel (0) target = $region41
    $region40: #{planning_forward.1} parent=1 // pred_region
      _
    $region41: #{planning_forward.1} parent=1 // pred_fallthru
      _
    %358 = vsyncpa [#allocation3], 1

</llo_original>
